<compile_context>
chip_gen: v5e
topology: v5e:2x2
jax: 0.10.0
libtpu: 0.0.40
codegen_flags: <defaults>
</compile_context>

<pallas_src>
import functools

import jax
import jax.numpy as jnp
import numpy as np
from jax.experimental import pallas as pl
from jax.experimental.pallas import tpu as pltpu

_LANES = 128


def _round_up(x, m):
    return (x + m - 1) // m * m


def _primitive_loss_kernel(x_ref, o_ref, *, prims):
    # x_ref: (tile, 128) lane-dense block; every `prims` consecutive lanes is
    #        one original row of sdf_samples.
    # o_ref: (8, 128) per-block partial sums (summed in the wrapper).
    x = x_ref[...].astype(jnp.float32)

    # Group-of-`prims` minimum tree along the lane axis.
    # pltpu.roll follows jnp.roll semantics, so roll(m, 128 - s) brings the
    # value of lane l+s to lane l.  After log2(prims) steps, lane l holds
    # min(x[l .. l+prims-1]); at group-start lanes (l % prims == 0, which
    # never wrap) that is exactly the row minimum.
    m = x
    s = 1
    while s < prims:
        m = jnp.minimum(m, pltpu.roll(m, _LANES - s, 1))
        s *= 2

    lane = jax.lax.broadcasted_iota(jnp.int32, m.shape, 1)
    sq = jnp.where(lane % prims == 0, m * m, 0.0)

    # Fold the tile down to one lane/sublane-dense (8, 128) partial (pure VPU
    # adds); the final cross-lane reduce happens once, outside the kernel.
    o_ref[...] = jnp.sum(sq.reshape(-1, 8, _LANES), axis=0)


def primitive_loss(sdf_samples, *, block_bytes=4 * 1024 * 1024):
    """Pallas implementation of PrimitiveLoss.forward."""
    shape = sdf_samples.shape
    prims = int(shape[-1])
    rows = int(np.prod(shape[:-1])) if len(shape) > 1 else 1

    if 128 % prims != 0:
        # TODO(synk): lane-dense packing needs prims | 128; fall back to plain XLA.
        return jnp.mean(jnp.square(jnp.min(sdf_samples, axis=-1))).astype(
            sdf_samples.dtype
        )

    total = rows * prims
    flat = sdf_samples.reshape(total)  # free view: input is contiguous

    packed_rows = pl.cdiv(total, _LANES)
    itemsize = jnp.dtype(sdf_samples.dtype).itemsize
    # ~4 MiB input blocks: big enough to amortize grid-step overhead, small
    # enough that double-buffering fits the default scoped VMEM on v5e..v7x.
    target_tile = max(8, (block_bytes // (_LANES * itemsize)) // 8 * 8)
    tile = min(target_tile, _round_up(packed_rows, 8))
    padded_rows = _round_up(packed_rows, tile)

    pad = padded_rows * _LANES - total
    if pad:
        # Zero padding is exact: prims | 128, so pad forms whole zero groups
        # (row min 0 -> squared contribution 0); we divide by the true `rows`.
        flat = jnp.pad(flat, (0, pad))
    x = flat.reshape(padded_rows, _LANES)

    num_blocks = padded_rows // tile

    partials = pl.pallas_call(
        functools.partial(_primitive_loss_kernel, prims=prims),
        out_shape=jax.ShapeDtypeStruct((num_blocks * 8, _LANES), jnp.float32),
        grid_spec=pltpu.PrefetchScalarGridSpec(
            num_scalar_prefetch=0,
            grid=(num_blocks,),
            in_specs=[pl.BlockSpec((tile, _LANES), lambda i: (i, 0))],
            out_specs=pl.BlockSpec((8, _LANES), lambda i: (i, 0)),
        ),
        compiler_params=pltpu.CompilerParams(
            # Independent per-block partials -> safe to shard across the two
            # TensorCores on v7x; harmless on single-TC v5e/v6e.
            dimension_semantics=("parallel",),
        ),
    )(x)

    loss = jnp.sum(partials) / jnp.float32(rows)
    return loss.astype(sdf_samples.dtype)


if __name__ == "__main__":
    key = jax.random.PRNGKey(0)

    # sdf_samples: [batch, num_points, num_primitives]
    B, N, P = 2, 64, 8
    sdf_samples = jax.random.normal(key, (B, N, P), dtype=jnp.float32)

    loss = primitive_loss(sdf_samples)
    loss = jax.block_until_ready(loss)
    ref = jnp.mean(jnp.square(jnp.min(sdf_samples, axis=-1, keepdims=True)))
    assert jnp.allclose(loss, ref, rtol=1e-5, atol=1e-6), (loss, ref)

    # Second shape exercising the zero-padding path (rows*prims % 128 != 0).
    sdf2 = jax.random.normal(jax.random.PRNGKey(1), (2, 33, 8), dtype=jnp.float32)
    loss2 = jax.block_until_ready(primitive_loss(sdf2))
    ref2 = jnp.mean(jnp.square(jnp.min(sdf2, axis=-1, keepdims=True)))
    assert jnp.allclose(loss2, ref2, rtol=1e-5, atol=1e-6), (loss2, ref2)

    print("KERNEL_OK")
</pallas_src>

<mosaic_0001>
module attributes {stable_mosaic.version = 11 : i64} {
  func.func @_primitive_loss_kernel(%arg0: i32, %arg1: memref<8x128xf32, #tpu.memory_space<vmem>>, %arg2: memref<8x128xf32, #tpu.memory_space<vmem>>) attributes {dimension_semantics = [#tpu.dimension_semantics<parallel>], iteration_bounds = array<i64: 1>, scalar_prefetch = 0 : i64, scratch_operands = 0 : i64, tpu.core_type = #tpu.core_type<tc>, window_params = [{transform_indices = @transform_0, window_bounds = array<i64: 8, 128>}, {transform_indices = @transform_1, window_bounds = array<i64: 8, 128>}]} {
    %c0 = arith.constant 0 : index
    %c0_0 = arith.constant 0 : index
    %0 = vector.load %arg1[%c0, %c0_0] : memref<8x128xf32, #tpu.memory_space<vmem>>, vector<8x128xf32>
    %c127_i32 = arith.constant 127 : i32
    %1 = tpu.dynamic_rotate %0 by %c127_i32 dim 1 : vector<8x128xf32>, i32 -> vector<8x128xf32>
    %2 = arith.minimumf %0, %1 : vector<8x128xf32>
    %c126_i32 = arith.constant 126 : i32
    %3 = tpu.dynamic_rotate %2 by %c126_i32 dim 1 : vector<8x128xf32>, i32 -> vector<8x128xf32>
    %4 = arith.minimumf %2, %3 : vector<8x128xf32>
    %c124_i32 = arith.constant 124 : i32
    %5 = tpu.dynamic_rotate %4 by %c124_i32 dim 1 : vector<8x128xf32>, i32 -> vector<8x128xf32>
    %6 = arith.minimumf %4, %5 : vector<8x128xf32>
    %7 = tpu.iota {dimensions = array<i32: 1>} : vector<8x128xi32>
    %c8_i32 = arith.constant 8 : i32
    %c0_i32 = arith.constant 0 : i32
    %8 = arith.cmpi eq, %c8_i32, %c0_i32 : i32
    %c1_i32 = arith.constant 1 : i32
    %9 = arith.select %8, %c1_i32, %c8_i32 : i32
    %10 = vector.broadcast %9 : i32 to vector<8x128xi32>
    %11 = arith.remsi %7, %10 : vector<8x128xi32>
    %c0_i32_1 = arith.constant 0 : i32
    %12 = vector.broadcast %c0_i32_1 : i32 to vector<8x128xi32>
    %13 = arith.cmpi ne, %11, %12 : vector<8x128xi32>
    %c0_i32_2 = arith.constant 0 : i32
    %14 = vector.broadcast %c0_i32_2 : i32 to vector<8x128xi32>
    %15 = arith.cmpi slt, %11, %14 : vector<8x128xi32>
    %c0_i32_3 = arith.constant 0 : i32
    %16 = arith.cmpi slt, %9, %c0_i32_3 : i32
    %17 = vector.broadcast %16 : i1 to vector<8x128xi1>
    %18 = vector.broadcast %17 : vector<8x128xi1> to vector<8x128xi1>
    %19 = arith.xori %15, %18 : vector<8x128xi1>
    %20 = arith.andi %19, %13 : vector<8x128xi1>
    %21 = vector.broadcast %9 : i32 to vector<8x128xi32>
    %22 = arith.addi %11, %21 : vector<8x128xi32>
    %23 = arith.select %20, %22, %11 : vector<8x128xi1>, vector<8x128xi32>
    %c0_i32_4 = arith.constant 0 : i32
    %24 = vector.broadcast %c0_i32_4 : i32 to vector<8x128xi32>
    %25 = arith.cmpi eq, %23, %24 : vector<8x128xi32>
    %26 = arith.mulf %6, %6 : vector<8x128xf32>
    %cst = arith.constant 0.000000e+00 : f32
    %27 = vector.broadcast %cst : f32 to vector<8x128xf32>
    %28 = arith.select %25, %26, %27 : vector<8x128xi1>, vector<8x128xf32>
    %29 = vector.shape_cast %28 : vector<8x128xf32> to vector<1x8x128xf32>
    %cst_5 = arith.constant dense<0.000000e+00> : vector<8x128xf32>
    %30 = vector.multi_reduction <add>, %29, %cst_5 [0] : vector<1x8x128xf32> to vector<8x128xf32>
    %c0_6 = arith.constant 0 : index
    %c0_7 = arith.constant 0 : index
    %31 = vector.load %arg2[%c0_6, %c0_7] : memref<8x128xf32, #tpu.memory_space<vmem>>, vector<8x128xf32>
    tpu.vector_store %arg2[%c0_6, %c0_7], %30 {strides = array<i32>} : memref<8x128xf32, #tpu.memory_space<vmem>>, vector<8x128xf32>,
    return
  }
  func.func @transform_0(%arg0: i32) -> (i32, i32) {
    %c0_i32 = arith.constant 0 : i32
    %c0_i32_0 = arith.constant 0 : i32
    return %arg0, %c0_i32 : i32, i32
  }
  func.func @transform_1(%arg0: i32) -> (i32, i32) {
    %c0_i32 = arith.constant 0 : i32
    %c0_i32_0 = arith.constant 0 : i32
    return %arg0, %c0_i32 : i32, i32
  }
}

</mosaic_0001>

<llo_original>
// kernel: tpu_custom_call.1
$region0: #{tpu_custom_call.1}
  #allocation0 [shape = 'u32[]', space=smem, size = 0x4, offset = 0x4, fixed_abs, tag = 'smem constant byte address 0x4 - core index']
  #allocation1 [shape = 'u32[72,128]{1,0:T(1,128)}', space=vmem, size = 0x9000, scoped, tag = 'internal scratch']
  %s0 = inlined_call_operand.hbm [shape: f32[8,128], index: 0, kind: input, shape index: {}]
  %s1 = inlined_call_operand.hbm [shape: f32[8,128], index: 1, kind: output, shape index: {}]
  %s2 = sld [smem:[#allocation0]]
  $region18: #{tpu_custom_call.1} parent=0
    _
  %s4 = ssub.s32 1, %s2
  %s5 = scalar_select 0, %s4, %s2
  $region1: #{tpu_custom_call.1} parent=0
    #allocation2 [shape = 'u8[4096]{0}', space=vmem, size = 0x1000, scoped, tag = 'input window, operand 0, single buffered']
    #allocation3 [shape = 's32[1]{0}', space=sflag, size = 0x4, scoped, tag = 'scoped memory for tpu_custom_call.1']
    #allocation4 [shape = 's32[1]{0}', space=sflag, size = 0x4, scoped, tag = 'scoped memory for tpu_custom_call.1']
    #allocation5 [shape = 'u8[4096]{0}', space=vmem, size = 0x1000, scoped, tag = 'output window, operand 0, single buffered']
    %6 = vsyncpa [#allocation3], 0
    %7 = vsyncpa [#allocation4], 0
    // Predicated region
    $region2: #{tpu_custom_call.1} parent=1 // pred_check
      _
    $region3: #{tpu_custom_call.1} parent=1 // pred_check_branch
      %9 = sbr.rel (0) target = $region5
    $region4: #{tpu_custom_call.1} parent=1 // pred_region
      %11 = vsyncadd [#allocation3], 0
      %s13 = sshll.u32 %s0, 4
      %s14 = int_to_ptr.hbm [resolvable:$true] %s13
      %s15 = sshll.u32 [#allocation2], 4
      %s16 = int_to_ptr.vmem [resolvable:$true] %s15
      %18 = dma.hbm_to_vmem [thread:$0]  %s14, 128, %s16, [#allocation3]
    $region5: #{tpu_custom_call.1} parent=1 // pred_fallthru
      _
    // Predicated region
    $region6: #{tpu_custom_call.1} parent=1 // pred_check
      _
    $region7: #{tpu_custom_call.1} parent=1 // pred_check_branch
      %20 = sbr.rel (0) target = $region9
    $region8: #{tpu_custom_call.1} parent=1 // pred_region
      %22 = dma.done [#allocation3], 128
    $region9: #{tpu_custom_call.1} parent=1 // pred_fallthru
      _
    %v23 = vld [vmem:[#allocation2] sm:$0xff]
    %24 = vrot.lane.b32.xlu0 %v23, 127
    %v25 = vpop.permute.xlu0 %24
    %v26 = vmin.f32 %v23, %v25
    %27 = vrot.lane.b32.xlu0 %v26, 126
    %v28 = vpop.permute.xlu0 %27
    %v29 = vmin.f32 %v26, %v28
    %30 = vrot.lane.b32.xlu0 %v29, 124
    %v31 = vpop.permute.xlu0 %30
    %v32 = vmin.f32 %v29, %v31
    %v33 = vlaneseq
    %v34 = vand.u32 %v33, 127
    %vm35 = vcmp.lt.s32.totalorder %v34, 0
    %v36 = vsub.s32 0, %v34
    %v37 = vsel %vm35, %v36, %v34
    %v38 = vshrl.u32 %v37, 3
    %v39 = vand.u32 %v37, 7
    %v40 = vsub.s32 0, %v39
    %v41 = vsel %vm35, %v40, %v39
    %vm42 = vcmp.ne.s32.totalorder %v41, 0
    %vm43 = vcmp.lt.s32.totalorder %v41, 0
    %vm44 = vmand %vm43, %vm42
    %v45 = vadd.s32 %v41, 8
    %v46 = vsel %vm44, %v45, %v41
    %vm47 = vcmp.eq.s32.totalorder %v46, 0
    %v48 = vmul.f32 %v32, %v32
    %v49 = vsel %vm47, %v48, 0.0
    %v50 = vadd.f32 %v49, 0.0
    %51 = vst [vmem:[#allocation5] sm:$0xff] %v50
    // Predicated region
    $region10: #{tpu_custom_call.1} parent=1 // pred_check
      _
    $region11: #{tpu_custom_call.1} parent=1 // pred_check_branch
      %53 = sbr.rel (0) target = $region13
    $region12: #{tpu_custom_call.1} parent=1 // pred_region
      %55 = vsyncadd [#allocation4], 0
      %s57 = sshll.u32 [#allocation5], 4
      %s58 = int_to_ptr.vmem [resolvable:$true] %s57
      %s59 = sshll.u32 %s1, 4
      %s60 = int_to_ptr.hbm [resolvable:$true] %s59
      %62 = dma.vmem_to_hbm [thread:$0]  %s58, 128, %s60, [#allocation4]
    $region13: #{tpu_custom_call.1} parent=1 // pred_fallthru
      _
    // Predicated region
    $region14: #{tpu_custom_call.1} parent=1 // pred_check
      _
    $region15: #{tpu_custom_call.1} parent=1 // pred_check_branch
      %64 = sbr.rel (0) target = $region17
    $region16: #{tpu_custom_call.1} parent=1 // pred_region
      %66 = dma.done [#allocation4], 128
    $region17: #{tpu_custom_call.1} parent=1 // pred_fallthru
      _
    %67 = vsyncpa [#allocation3], 1
    %68 = vsyncpa [#allocation4], 1

</llo_original>
